<compile_context>
chip_gen: v7x
topology: tpu7x:2x2x1
jax: 0.10.0
libtpu: 0.0.40
codegen_flags: <defaults>
</compile_context>

<pallas_src>
from functools import partial

import jax
import jax.numpy as jnp
from jax.experimental import pallas as pl
from jax.experimental.pallas import tpu as pltpu


def _bahdanau_kernel(*refs, multiple, block_b, seq, units):
    """One batch tile of Bt independent attention instances.

    multiple=True  refs: x, x1, x2, w(3,U,U), b(1,U), v(1,U), ctx(Bt,U), attn(Bt,S,1)
    multiple=False refs: x,          w(1,U,U), b(1,U), v(1,U), ctx(Bt,U), attn(Bt,S,1)
    """
    if multiple:
        x_ref, x1_ref, x2_ref, w_ref, b_ref, v_ref, ctx_ref, attn_ref = refs
    else:
        x_ref, w_ref, b_ref, v_ref, ctx_ref, attn_ref = refs

    rows = block_b * seq
    x3 = x_ref[...]                                    # (Bt, S, U)  compute dtype
    x2d = x3.reshape(rows, units)                      # sublane-aligned merge (S == 8)

    # 1) Additive projection: tall MXU matmuls against resident weights, f32 accumulation.
    pre = jnp.dot(x2d, w_ref[0], preferred_element_type=jnp.float32)
    if multiple:
        pre = pre + jnp.dot(x1_ref[...].reshape(rows, units), w_ref[1],
                            preferred_element_type=jnp.float32)
        pre = pre + jnp.dot(x2_ref[...].reshape(rows, units), w_ref[2],
                            preferred_element_type=jnp.float32)
    h = jnp.tanh(pre + b_ref[...])                     # (Bt*S, U) f32, EUP tanh

    # 2) score[row] = sum_u V[u] * h[row, u]  -- VPU mul + lane reduce (no M=1 MXU pass).
    score = jnp.sum(h * v_ref[...], axis=-1, keepdims=True)       # (Bt*S, 1) f32
    score3 = score.reshape(block_b, seq, 1)                       # (Bt, S, 1)

    # 3) Per-instance softmax over the sequence axis (sublane reduces; EUP reciprocal).
    m = jnp.max(score3, axis=1, keepdims=True)                    # (Bt, 1, 1)
    e = jnp.exp(score3 - m)
    attn = e * pl.reciprocal(jnp.sum(e, axis=1, keepdims=True), approx=True)

    # 4) context[i, u] = sum_s attn[i, s] * x[i, s, u]  -- VPU mul + sublane reduce.
    #    attn stays f32; only x is in compute_dtype.
    ctx = jnp.sum(attn * x3.astype(jnp.float32), axis=1)          # (Bt, U) f32

    ctx_ref[...] = ctx.astype(ctx_ref.dtype)
    attn_ref[...] = attn.astype(attn_ref.dtype)


def _prep_params(params, multiple, compute_dtype):
    W1, b1, W2, b2, W3, b3, V, bV = params
    U = W2.shape[0]
    if multiple:
        w = jnp.stack([W2.T, W1.T, W3.T], axis=0)      # (3, U, U), pre-transposed
        b = (b1 + b2 + b3).reshape(1, U)
    else:
        w = W2.T[None]                                 # (1, U, U)
        b = b2.reshape(1, U)
    # bV intentionally dropped: softmax is shift-invariant, cannot change either output.
    return (w.astype(compute_dtype), b.astype(jnp.float32),
            V.reshape(1, U).astype(jnp.float32))


def _pick_block_b(B, block_b):
    if block_b is None:
        if B <= 8:
            return B
        # Aim for >= 2 grid blocks (feeds both v7x TensorCores) with 8-aligned batch tiles.
        block_b = min(256, -(-((B + 1) // 2) // 8) * 8)
    if block_b >= B:
        return B
    return -(-block_b // 8) * 8        # multiple blocks -> batch tile must be 8-aligned


def bahdanau_attention_batched(params, enc, enc1=None, enc2=None, *, multiple=True,
                               compute_dtype=jnp.float32, block_b=None):
    """Batched independent instances: enc*: (B, S, U) -> (ctx (B,1,U), attn (B,1,S))."""
    B, S, U = enc.shape
    w, b, v_row = _prep_params(params, multiple, compute_dtype)

    bt = _pick_block_b(B, block_b)
    n_blk = -(-B // bt)
    Bp = n_blk * bt

    def prep(a):
        a = a.astype(compute_dtype)
        if Bp != B:
            a = jnp.pad(a, ((0, Bp - B), (0, 0), (0, 0)))   # zero pad: softmax stays finite
        return a

    xs = [prep(enc)] + ([prep(enc1), prep(enc2)] if multiple else [])

    x_spec = pl.BlockSpec((bt, S, U), lambda i: (i, 0, 0))        # streamed batch tile
    in_specs = ([x_spec] * len(xs) + [
        pl.BlockSpec(w.shape, lambda i: (0, 0, 0)),               # resident stacked weights
        pl.BlockSpec((1, U), lambda i: (0, 0)),                   # resident fused bias
        pl.BlockSpec((1, U), lambda i: (0, 0)),                   # resident V row
    ])
    out_specs = (pl.BlockSpec((bt, U), lambda i: (i, 0)),
                 pl.BlockSpec((bt, S, 1), lambda i: (i, 0, 0)))

    ctx, attn = pl.pallas_call(
        partial(_bahdanau_kernel, multiple=multiple, block_b=bt, seq=S, units=U),
        out_shape=(jax.ShapeDtypeStruct((Bp, U), jnp.float32),
                   jax.ShapeDtypeStruct((Bp, S, 1), jnp.float32)),
        grid=(n_blk,),
        in_specs=in_specs,
        out_specs=out_specs,
        compiler_params=pltpu.CompilerParams(
            dimension_semantics=("parallel",),
            vmem_limit_bytes=32 * 1024 * 1024),
    )(*xs, w, b, v_row)

    return ctx[:B].reshape(B, 1, U), attn[:B, :, 0].reshape(B, 1, S)


def bahdanau_attention(params, encoder_inputs, encoder_inputs1, encoder_inputs2,
                       multiple=True, compute_dtype=jnp.float32):
    """Module-faithful single instance: enc*: (S, 1, U) -> (ctx (1,1,U), attn (1,S))."""
    S, B1, U = encoder_inputs.shape
    assert B1 == 1, "PyTorch reference requires middle dim == 1"
    to_b = lambda a: a.transpose(1, 0, 2)              # (1, S, U)
    ctx, attn = bahdanau_attention_batched(
        params, to_b(encoder_inputs), to_b(encoder_inputs1), to_b(encoder_inputs2),
        multiple=multiple, compute_dtype=compute_dtype)
    return ctx[0:1], attn[0]                           # ctx (1,1,U); attn (1,S)


def bahdanau_reference(params, x, x1, x2, multiple=True):
    """Pure-JAX replica of the PyTorch forward on 2-D (S, U) inputs (keeps bV)."""
    W1, b1, W2, b2, W3, b3, V, bV = params
    if multiple:
        pre = (x @ W2.T + b2) + (x1 @ W1.T + b1) + (x2 @ W3.T + b3)
    else:
        pre = x @ W2.T + b2
    score = jnp.tanh(pre) @ V.T + bV                   # (S, 1)
    attn = jax.nn.softmax(score, axis=0)               # softmax over sequence dim
    attn_w = attn.T                                    # squeeze(1).permute(1,0) -> (1, S)
    ctx = attn_w @ x                                   # (1, U)
    return ctx, attn_w


def init_params(key, units):
    # Deterministic synthetic init mimicking torch.nn.Linear default (+-1/sqrt(fan_in)).
    ks = jax.random.split(key, 8)
    bound = 1.0 / (units ** 0.5)
    u = lambda k, shape: jax.random.uniform(k, shape, jnp.float32, -bound, bound)
    W1, b1 = u(ks[0], (units, units)), u(ks[1], (units,))
    W2, b2 = u(ks[2], (units, units)), u(ks[3], (units,))
    W3, b3 = u(ks[4], (units, units)), u(ks[5], (units,))
    V, bV = u(ks[6], (1, units)), u(ks[7], (1,))
    return (W1, b1, W2, b2, W3, b3, V, bV)


if __name__ == "__main__":
    S, U, B = 8, 32, 4
    key = jax.random.PRNGKey(0)
    kp, k0, k1, k2 = jax.random.split(key, 4)

    params = init_params(kp, U)
    enc_b = jax.random.normal(k0, (B, S, U), jnp.float32)
    enc1_b = jax.random.normal(k1, (B, S, U), jnp.float32)
    enc2_b = jax.random.normal(k2, (B, S, U), jnp.float32)

    ok = True

    # 1) Module-faithful single instance (B=1 block through the batched kernel).
    for multiple in (True, False):
        enc = enc_b[0, :, None, :]
        enc1 = enc1_b[0, :, None, :]
        enc2 = enc2_b[0, :, None, :]
        ctx, attn = bahdanau_attention(params, enc, enc1, enc2, multiple=multiple)
        ctx = jax.block_until_ready(ctx)
        attn = jax.block_until_ready(attn)
        ctx_ref, attn_ref = bahdanau_reference(params, enc_b[0], enc1_b[0], enc2_b[0],
                                               multiple=multiple)
        ok &= ctx.shape == (1, 1, U) and attn.shape == (1, S)
        ok &= bool(jnp.allclose(ctx[:, 0, :], ctx_ref, atol=2e-3, rtol=2e-3))
        ok &= bool(jnp.allclose(attn, attn_ref, atol=2e-3, rtol=2e-3))

    # 2) Batched path: f32 and bf16 MXU inputs (bf16 is fine on v5e/v6e/v7x; acc stays f32).
    for compute_dtype, tol in ((jnp.float32, 2e-3), (jnp.bfloat16, 5e-2)):
        ctx, attn = bahdanau_attention_batched(params, enc_b, enc1_b, enc2_b,
                                               multiple=True,
                                               compute_dtype=compute_dtype)
        ctx = jax.block_until_ready(ctx)
        attn = jax.block_until_ready(attn)
        for bi in range(B):
            ctx_ref, attn_ref = bahdanau_reference(params, enc_b[bi], enc1_b[bi],
                                                   enc2_b[bi], multiple=True)
            ok &= bool(jnp.allclose(ctx[bi], ctx_ref, atol=tol, rtol=tol))
            ok &= bool(jnp.allclose(attn[bi], attn_ref, atol=tol, rtol=tol))

    # 3) Multi-block grid with batch padding (exercises >=2 grid blocks + pad path).
    B2 = 20
    k3, k4, k5 = jax.random.split(jax.random.PRNGKey(1), 3)
    e0 = jax.random.normal(k3, (B2, S, U), jnp.float32)
    e1 = jax.random.normal(k4, (B2, S, U), jnp.float32)
    e2 = jax.random.normal(k5, (B2, S, U), jnp.float32)
    ctx, attn = bahdanau_attention_batched(params, e0, e1, e2, multiple=True, block_b=8)
    ctx = jax.block_until_ready(ctx)
    attn = jax.block_until_ready(attn)
    ok &= ctx.shape == (B2, 1, U) and attn.shape == (B2, 1, S)
    for bi in range(B2):
        ctx_ref, attn_ref = bahdanau_reference(params, e0[bi], e1[bi], e2[bi],
                                               multiple=True)
        ok &= bool(jnp.allclose(ctx[bi], ctx_ref, atol=2e-3, rtol=2e-3))
        ok &= bool(jnp.allclose(attn[bi], attn_ref, atol=2e-3, rtol=2e-3))

    print("KERNEL_OK" if ok else "MISMATCH")
</pallas_src>

<mosaic_0001>
module attributes {stable_mosaic.version = 11 : i64} {
  func.func @_bahdanau_kernel(%arg0: i32, %arg1: memref<1x8x32xf32, #tpu.memory_space<vmem>>, %arg2: memref<1x8x32xf32, #tpu.memory_space<vmem>>, %arg3: memref<1x8x32xf32, #tpu.memory_space<vmem>>, %arg4: memref<3x32x32xf32, #tpu.memory_space<vmem>>, %arg5: memref<1x32xf32, #tpu.memory_space<vmem>>, %arg6: memref<1x32xf32, #tpu.memory_space<vmem>>, %arg7: memref<1x32xf32, #tpu.memory_space<vmem>>, %arg8: memref<1x8x1xf32, #tpu.memory_space<vmem>>) attributes {dimension_semantics = [#tpu.dimension_semantics<parallel>], iteration_bounds = array<i64: 1>, scalar_prefetch = 0 : i64, scratch_operands = 0 : i64, tpu.core_type = #tpu.core_type<tc>, window_params = [{transform_indices = @transform_0, window_bounds = array<i64: 1, 8, 32>}, {transform_indices = @transform_1, window_bounds = array<i64: 1, 8, 32>}, {transform_indices = @transform_2, window_bounds = array<i64: 1, 8, 32>}, {pipeline_mode = #tpu.pipeline_mode<synchronous>, transform_indices = @transform_3, window_bounds = array<i64: 3, 32, 32>}, {pipeline_mode = #tpu.pipeline_mode<synchronous>, transform_indices = @transform_4, window_bounds = array<i64: 1, 32>}, {pipeline_mode = #tpu.pipeline_mode<synchronous>, transform_indices = @transform_5, window_bounds = array<i64: 1, 32>}, {transform_indices = @transform_6, window_bounds = array<i64: 1, 32>}, {transform_indices = @transform_7, window_bounds = array<i64: 1, 8, 1>}]} {
    %c0 = arith.constant 0 : index
    %c0_0 = arith.constant 0 : index
    %c0_1 = arith.constant 0 : index
    %0 = vector.load %arg1[%c0, %c0_0, %c0_1] : memref<1x8x32xf32, #tpu.memory_space<vmem>>, vector<1x8x32xf32>
    %1 = vector.shape_cast %0 : vector<1x8x32xf32> to vector<8x32xf32>
    %c0_2 = arith.constant 0 : index
    %c0_3 = arith.constant 0 : index
    %c0_4 = arith.constant 0 : index
    %2 = vector.load %arg4[%c0_2, %c0_3, %c0_4] : memref<3x32x32xf32, #tpu.memory_space<vmem>>, vector<1x32x32xf32>
    %3 = vector.shape_cast %2 : vector<1x32x32xf32> to vector<32x32xf32>
    %cst = arith.constant dense<0.000000e+00> : vector<8x32xf32>
    %4 = tpu.matmul %1, %3, %cst {dimension_numbers = #tpu.dot_dimension_numbers<[1], [0], [0], [1], [0, 0, 1, 1], [], []>} : vector<8x32xf32>, vector<32x32xf32>, vector<8x32xf32> -> vector<8x32xf32>
    %c0_5 = arith.constant 0 : index
    %c0_6 = arith.constant 0 : index
    %c0_7 = arith.constant 0 : index
    %5 = vector.load %arg2[%c0_5, %c0_6, %c0_7] : memref<1x8x32xf32, #tpu.memory_space<vmem>>, vector<1x8x32xf32>
    %6 = vector.shape_cast %5 : vector<1x8x32xf32> to vector<8x32xf32>
    %c1 = arith.constant 1 : index
    %c0_8 = arith.constant 0 : index
    %c0_9 = arith.constant 0 : index
    %7 = vector.load %arg4[%c1, %c0_8, %c0_9] : memref<3x32x32xf32, #tpu.memory_space<vmem>>, vector<1x32x32xf32>
    %8 = vector.shape_cast %7 : vector<1x32x32xf32> to vector<32x32xf32>
    %cst_10 = arith.constant dense<0.000000e+00> : vector<8x32xf32>
    %9 = tpu.matmul %6, %8, %cst_10 {dimension_numbers = #tpu.dot_dimension_numbers<[1], [0], [0], [1], [0, 0, 1, 1], [], []>} : vector<8x32xf32>, vector<32x32xf32>, vector<8x32xf32> -> vector<8x32xf32>
    %10 = arith.addf %4, %9 : vector<8x32xf32>
    %c0_11 = arith.constant 0 : index
    %c0_12 = arith.constant 0 : index
    %c0_13 = arith.constant 0 : index
    %11 = vector.load %arg3[%c0_11, %c0_12, %c0_13] : memref<1x8x32xf32, #tpu.memory_space<vmem>>, vector<1x8x32xf32>
    %12 = vector.shape_cast %11 : vector<1x8x32xf32> to vector<8x32xf32>
    %c2 = arith.constant 2 : index
    %c0_14 = arith.constant 0 : index
    %c0_15 = arith.constant 0 : index
    %13 = vector.load %arg4[%c2, %c0_14, %c0_15] : memref<3x32x32xf32, #tpu.memory_space<vmem>>, vector<1x32x32xf32>
    %14 = vector.shape_cast %13 : vector<1x32x32xf32> to vector<32x32xf32>
    %cst_16 = arith.constant dense<0.000000e+00> : vector<8x32xf32>
    %15 = tpu.matmul %12, %14, %cst_16 {dimension_numbers = #tpu.dot_dimension_numbers<[1], [0], [0], [1], [0, 0, 1, 1], [], []>} : vector<8x32xf32>, vector<32x32xf32>, vector<8x32xf32> -> vector<8x32xf32>
    %16 = arith.addf %10, %15 : vector<8x32xf32>
    %c0_17 = arith.constant 0 : index
    %c0_18 = arith.constant 0 : index
    %17 = vector.load %arg5[%c0_17, %c0_18] : memref<1x32xf32, #tpu.memory_space<vmem>>, vector<1x32xf32>
    %18 = vector.broadcast %17 : vector<1x32xf32> to vector<8x32xf32>
    %19 = arith.addf %16, %18 : vector<8x32xf32>
    %20 = math.tanh %19 : vector<8x32xf32>
    %c0_19 = arith.constant 0 : index
    %c0_20 = arith.constant 0 : index
    %21 = vector.load %arg6[%c0_19, %c0_20] : memref<1x32xf32, #tpu.memory_space<vmem>>, vector<1x32xf32>
    %22 = vector.broadcast %21 : vector<1x32xf32> to vector<8x32xf32>
    %23 = arith.mulf %20, %22 : vector<8x32xf32>
    %cst_21 = arith.constant dense<0.000000e+00> : vector<8xf32>
    %24 = vector.multi_reduction <add>, %23, %cst_21 [1] : vector<8x32xf32> to vector<8xf32>
    %25 = vector.shape_cast %24 : vector<8xf32> to vector<8x1xf32>
    %26 = vector.shape_cast %25 : vector<8x1xf32> to vector<1x8x1xf32>
    %cst_22 = arith.constant dense<0xFF800000> : vector<1x1xf32>
    %27 = vector.multi_reduction <maximumf>, %26, %cst_22 [1] : vector<1x8x1xf32> to vector<1x1xf32>
    %28 = vector.shape_cast %27 : vector<1x1xf32> to vector<1x1x1xf32>
    %29 = vector.broadcast %28 : vector<1x1x1xf32> to vector<1x8x1xf32>
    %30 = arith.subf %26, %29 : vector<1x8x1xf32>
    %31 = math.exp %30 : vector<1x8x1xf32>
    %cst_23 = arith.constant dense<0.000000e+00> : vector<1x1xf32>
    %32 = vector.multi_reduction <add>, %31, %cst_23 [1] : vector<1x8x1xf32> to vector<1x1xf32>
    %33 = vector.shape_cast %32 : vector<1x1xf32> to vector<1x1x1xf32>
    %34 = tpu.reciprocal %33 {approx = true} : vector<1x1x1xf32> -> vector<1x1x1xf32>
    %35 = vector.broadcast %34 : vector<1x1x1xf32> to vector<1x8x1xf32>
    %36 = arith.mulf %31, %35 : vector<1x8x1xf32>
    %37 = vector.broadcast %36 : vector<1x8x1xf32> to vector<1x8x32xf32>
    %38 = arith.mulf %37, %0 : vector<1x8x32xf32>
    %cst_24 = arith.constant dense<0.000000e+00> : vector<1x32xf32>
    %39 = vector.multi_reduction <add>, %38, %cst_24 [1] : vector<1x8x32xf32> to vector<1x32xf32>
    %c0_25 = arith.constant 0 : index
    %c0_26 = arith.constant 0 : index
    %40 = vector.load %arg7[%c0_25, %c0_26] : memref<1x32xf32, #tpu.memory_space<vmem>>, vector<1x32xf32>
    tpu.vector_store %arg7[%c0_25, %c0_26], %39 {strides = array<i32>} : memref<1x32xf32, #tpu.memory_space<vmem>>, vector<1x32xf32>,
    %c0_27 = arith.constant 0 : index
    %c0_28 = arith.constant 0 : index
    %c0_29 = arith.constant 0 : index
    %41 = vector.load %arg8[%c0_27, %c0_28, %c0_29] : memref<1x8x1xf32, #tpu.memory_space<vmem>>, vector<1x8x1xf32>
    tpu.vector_store %arg8[%c0_27, %c0_28, %c0_29], %36 {strides = array<i32>} : memref<1x8x1xf32, #tpu.memory_space<vmem>>, vector<1x8x1xf32>,
    return
  }
  func.func @transform_0(%arg0: i32) -> (i32, i32, i32) {
    %c0_i32 = arith.constant 0 : i32
    %c0_i32_0 = arith.constant 0 : i32
    %c0_i32_1 = arith.constant 0 : i32
    return %arg0, %c0_i32, %c0_i32_0 : i32, i32, i32
  }
  func.func @transform_1(%arg0: i32) -> (i32, i32, i32) {
    %c0_i32 = arith.constant 0 : i32
    %c0_i32_0 = arith.constant 0 : i32
    %c0_i32_1 = arith.constant 0 : i32
    return %arg0, %c0_i32, %c0_i32_0 : i32, i32, i32
  }
  func.func @transform_2(%arg0: i32) -> (i32, i32, i32) {
    %c0_i32 = arith.constant 0 : i32
    %c0_i32_0 = arith.constant 0 : i32
    %c0_i32_1 = arith.constant 0 : i32
    return %arg0, %c0_i32, %c0_i32_0 : i32, i32, i32
  }
  func.func @transform_3(%arg0: i32) -> (i32, i32, i32) {
    %c0_i32 = arith.constant 0 : i32
    %c0_i32_0 = arith.constant 0 : i32
    %c0_i32_1 = arith.constant 0 : i32
    %c0_i32_2 = arith.constant 0 : i32
    return %c0_i32, %c0_i32_0, %c0_i32_1 : i32, i32, i32
  }
  func.func @transform_4(%arg0: i32) -> (i32, i32) {
    %c0_i32 = arith.constant 0 : i32
    %c0_i32_0 = arith.constant 0 : i32
    %c0_i32_1 = arith.constant 0 : i32
    return %c0_i32, %c0_i32_0 : i32, i32
  }
  func.func @transform_5(%arg0: i32) -> (i32, i32) {
    %c0_i32 = arith.constant 0 : i32
    %c0_i32_0 = arith.constant 0 : i32
    %c0_i32_1 = arith.constant 0 : i32
    return %c0_i32, %c0_i32_0 : i32, i32
  }
  func.func @transform_6(%arg0: i32) -> (i32, i32) {
    %c0_i32 = arith.constant 0 : i32
    %c0_i32_0 = arith.constant 0 : i32
    return %arg0, %c0_i32 : i32, i32
  }
  func.func @transform_7(%arg0: i32) -> (i32, i32, i32) {
    %c0_i32 = arith.constant 0 : i32
    %c0_i32_0 = arith.constant 0 : i32
    %c0_i32_1 = arith.constant 0 : i32
    return %arg0, %c0_i32, %c0_i32_0 : i32, i32, i32
  }
}

</mosaic_0001>

<llo_original>
// kernel: tpu_custom_call.1
$region0: #{tpu_custom_call.1}
  #allocation0 [shape = 'u32[]', space=smem, size = 0x4, offset = 0x4, fixed_abs, tag = 'smem constant byte address 0x4 - core index']
  #allocation1 [shape = 'u32[144,128]{1,0:T(1,128)}', space=vmem, size = 0x12000, scoped, tag = 'internal scratch']
  %s0 = inlined_call_operand.hbm [shape: f32[1,8,32], index: 0, kind: input, shape index: {}]
  %s1 = inlined_call_operand.hbm [shape: f32[1,8,32], index: 1, kind: input, shape index: {}]
  %s2 = inlined_call_operand.hbm [shape: f32[1,8,32], index: 2, kind: input, shape index: {}]
  %s3 = inlined_call_operand.hbm [shape: f32[3,32,32], index: 3, kind: input, shape index: {}]
  %s4 = inlined_call_operand.vmem [shape: f32[1,32], index: 4, kind: input, shape index: {}]
  %s5 = inlined_call_operand.vmem [shape: f32[1,32], index: 5, kind: input, shape index: {}]
  %s6 = inlined_call_operand.hbm [shape: f32[1,32], index: 6, kind: output, shape index: {0}]
  %s7 = inlined_call_operand.vmem [shape: f32[1,8,1], index: 7, kind: output, shape index: {1}]
  %8 = xla_tuple %s6, %s7
  %s9 = sld [smem:[#allocation0]]
  $region58: #{tpu_custom_call.1} parent=0
    _
  %s11 = ssub.s32 1, %s9
  %s12 = scalar_select 0, %s11, %s9
  $region1: #{tpu_custom_call.1} parent=0
    #allocation2 [shape = 'u8[4096]{0}', space=vmem, size = 0x1000, scoped, tag = 'input window, operand 0, single buffered']
    #allocation3 [shape = 's32[1]{0}', space=sflag, size = 0x4, scoped, tag = 'scoped memory for tpu_custom_call.1']
    #allocation4 [shape = 's32[1]{0}', space=sflag, size = 0x4, scoped, tag = 'scoped memory for tpu_custom_call.1']
    #allocation5 [shape = 'u8[4096]{0}', space=vmem, size = 0x1000, scoped, tag = 'input window, operand 1, single buffered']
    #allocation6 [shape = 's32[1]{0}', space=sflag, size = 0x4, scoped, tag = 'scoped memory for tpu_custom_call.1']
    #allocation7 [shape = 'u8[4096]{0}', space=vmem, size = 0x1000, scoped, tag = 'input window, operand 2, single buffered']
    #allocation8 [shape = 'u8[49152]{0}', space=vmem, size = 0xc000, scoped, tag = 'input window, operand 3, single buffered']
    #allocation9 [shape = 's32[1]{0}', space=sflag, size = 0x4, scoped, tag = 'scoped memory for tpu_custom_call.1']
    #allocation10 [shape = 'u8[512]{0}', space=vmem, size = 0x400, scoped, tag = 'output window, operand 0, single buffered']
    %13 = vsyncpa [#allocation3], 0
    %14 = vsyncpa [#allocation6], 0
    %15 = vsyncpa [#allocation9], 0
    %16 = vsyncpa [#allocation4], 0
    // Predicated region
    $region2: #{tpu_custom_call.1} parent=1 // pred_check
      _
    $region3: #{tpu_custom_call.1} parent=1 // pred_check_branch
      %18 = sbr.rel (0) target = $region5
    $region4: #{tpu_custom_call.1} parent=1 // pred_region
      %s20 = ssub.s32 128, 128
      %21 = vsyncadd [#allocation3], %s20
      %s23 = sshll.u32 [#allocation2], 4
      %s24 = int_to_ptr.vmem [resolvable:$true] %s23
      %26 = dma.hbm_to_vmem [thread:$0]  %s0, 128, %s24, [#allocation3]
    $region5: #{tpu_custom_call.1} parent=1 // pred_fallthru
      _
    // Predicated region
    $region6: #{tpu_custom_call.1} parent=1 // pred_check
      _
    $region7: #{tpu_custom_call.1} parent=1 // pred_check_branch
      %28 = sbr.rel (0) target = $region9
    $region8: #{tpu_custom_call.1} parent=1 // pred_region
      %s30 = ssub.s32 128, 128
      %31 = vsyncadd [#allocation6], %s30
      %s33 = sshll.u32 [#allocation5], 4
      %s34 = int_to_ptr.vmem [resolvable:$true] %s33
      %36 = dma.hbm_to_vmem [thread:$0]  %s1, 128, %s34, [#allocation6]
    $region9: #{tpu_custom_call.1} parent=1 // pred_fallthru
      _
    // Predicated region
    $region10: #{tpu_custom_call.1} parent=1 // pred_check
      _
    $region11: #{tpu_custom_call.1} parent=1 // pred_check_branch
      %38 = sbr.rel (0) target = $region13
    $region12: #{tpu_custom_call.1} parent=1 // pred_region
      %s40 = ssub.s32 128, 128
      %41 = vsyncadd [#allocation6], %s40
      %s43 = sshll.u32 [#allocation7], 4
      %s44 = int_to_ptr.vmem [resolvable:$true] %s43
      %46 = dma.hbm_to_vmem [thread:$0]  %s2, 128, %s44, [#allocation6]
    $region13: #{tpu_custom_call.1} parent=1 // pred_fallthru
      _
    // Predicated region
    $region14: #{tpu_custom_call.1} parent=1 // pred_check
      _
    $region15: #{tpu_custom_call.1} parent=1 // pred_check_branch
      %48 = sbr.rel (0) target = $region17
    $region16: #{tpu_custom_call.1} parent=1 // pred_region
      %s50 = ssub.s32 1536, 1536
      %51 = vsyncadd [#allocation9], %s50
      %s52 = sshll.u32 [#allocation8], 4
      %s53 = int_to_ptr.vmem [resolvable:$true] %s52
      %58 = dma.hbm_to_vmem [thread:$0]  %s3, 1536, %s53, [#allocation9], 128, 128, 8
    $region17: #{tpu_custom_call.1} parent=1 // pred_fallthru
      _
    // Predicated region
    $region18: #{tpu_custom_call.1} parent=1 // pred_check
      _
    $region19: #{tpu_custom_call.1} parent=1 // pred_check_branch
      %60 = sbr.rel (0) target = $region21
    $region20: #{tpu_custom_call.1} parent=1 // pred_region
      _
    $region21: #{tpu_custom_call.1} parent=1 // pred_fallthru
      _
    // Predicated region
    $region22: #{tpu_custom_call.1} parent=1 // pred_check
      _
    $region23: #{tpu_custom_call.1} parent=1 // pred_check_branch
      %62 = sbr.rel (0) target = $region25
    $region24: #{tpu_custom_call.1} parent=1 // pred_region
      _
    $region25: #{tpu_custom_call.1} parent=1 // pred_fallthru
      _
    // Predicated region
    $region26: #{tpu_custom_call.1} parent=1 // pred_check
      _
    $region27: #{tpu_custom_call.1} parent=1 // pred_check_branch
      %64 = sbr.rel (0) target = $region29
    $region28: #{tpu_custom_call.1} parent=1 // pred_region
      %65 = dma.done [#allocation3], 128
    $region29: #{tpu_custom_call.1} parent=1 // pred_fallthru
      _
    // Predicated region
    $region30: #{tpu_custom_call.1} parent=1 // pred_check
      _
    $region31: #{tpu_custom_call.1} parent=1 // pred_check_branch
      %67 = sbr.rel (0) target = $region33
    $region32: #{tpu_custom_call.1} parent=1 // pred_region
      %68 = dma.done [#allocation6], 128
    $region33: #{tpu_custom_call.1} parent=1 // pred_fallthru
      _
    // Predicated region
    $region34: #{tpu_custom_call.1} parent=1 // pred_check
      _
    $region35: #{tpu_custom_call.1} parent=1 // pred_check_branch
      %70 = sbr.rel (0) target = $region37
    $region36: #{tpu_custom_call.1} parent=1 // pred_region
      %71 = dma.done [#allocation6], 128
    $region37: #{tpu_custom_call.1} parent=1 // pred_fallthru
      _
    // Predicated region
    $region38: #{tpu_custom_call.1} parent=1 // pred_check
      _
    $region39: #{tpu_custom_call.1} parent=1 // pred_check_branch
      %73 = sbr.rel (0) target = $region41
    $region40: #{tpu_custom_call.1} parent=1 // pred_region
      %74 = dma.done [#allocation9], 1536
    $region41: #{tpu_custom_call.1} parent=1 // pred_fallthru
      _
    %v75 = vld [vmem:[#allocation2] sm:$0xff]
    %v76 = vld [vmem:[#allocation8] sm:$0xff]
    %v77 = vld [vmem:[#allocation8 + $0x8] sm:$0xff]
    %v78 = vld [vmem:[#allocation8 + $0x10] sm:$0xff]
    %v79 = vld [vmem:[#allocation8 + $0x18] sm:$0xff]
    %v80 = vld [vmem:[#allocation5] sm:$0xff]
    %s81 = scalar_lea.vmem [#allocation8], 32
    %v82 = vld [vmem:[%s81] sm:$0xff]
    %v83 = vld [vmem:[%s81 + $0x8] sm:$0xff]
    %v84 = vld [vmem:[%s81 + $0x10] sm:$0xff]
    %v85 = vld [vmem:[%s81 + $0x18] sm:$0xff]
    %vm86 = vcmask 261120
    %v88 = vsel %vm86, %v80, 0
    %90 = vmatprep.subr.mxu0 0.0
    %91 = vmatpush1.msra.mxu0 %v82
    %92 = vmatprep.subr.mxu0 0.0
    %93 = vmatpush1.msra.mxu0 %v83
    %94 = vmatprep.subr.mxu0 0.0
    %95 = vmatpush1.msra.mxu0 %v84
    %96 = vmatprep.subr.mxu0 0.0
    %97 = vmatpush1.msra.mxu0 %v85
    %98 = vmatprep.subr.mxu0 0.0
    %99 = vmatpush1.msra.mxu0 0.0
    %100 = vmatprep.subr.mxu0 0.0
    %101 = vmatpush1.msra.mxu0 0.0
    %102 = vmatprep.subr.mxu0 0.0
    %103 = vmatpush1.msra.mxu0 0.0
    %104 = vmatprep.subr.mxu0 0.0
    %105 = vmatpush1.msra.mxu0 0.0
    %106 = vmatprep.subr.mxu0 0.0
    %107 = vmatpush1.msra.mxu0 0.0
    %108 = vmatprep.subr.mxu0 0.0
    %109 = vmatpush1.msra.mxu0 0.0
    %110 = vmatprep.subr.mxu0 0.0
    %111 = vmatpush1.msra.mxu0 0.0
    %112 = vmatprep.subr.mxu0 0.0
    %113 = vmatpush1.msra.mxu0 0.0
    %114 = vmatprep.subr.mxu0 0.0
    %115 = vmatpush1.msra.mxu0 0.0
    %116 = vmatprep.subr.mxu0 0.0
    %117 = vmatpush1.msra.mxu0 0.0
    %118 = vmatprep.subr.mxu0 0.0
    %119 = vmatpush1.msra.mxu0 0.0
    %120 = vmatprep.subr.mxu0 0.0
    %121 = vmatpush1.msra.mxu0 0.0
    %122 = vmatprep.subr.mxu0 0.0
    %123 = vmatpush1.msra.mxu0 0.0
    %124 = vmatprep.subr.mxu0 0.0
    %125 = vmatpush1.msra.mxu0 0.0
    %126 = vmatprep.subr.mxu0 0.0
    %127 = vmatpush1.msra.mxu0 0.0
    %128 = vmatprep.subr.mxu0 0.0
    %129 = vmatpush1.msra.mxu0 0.0
    %130 = vmatprep.subr.mxu0 0.0
    %131 = vmatpush1.msra.mxu0 0.0
    %132 = vmatprep.subr.mxu0 0.0
    %133 = vmatpush1.msra.mxu0 0.0
    %134 = vmatprep.subr.mxu0 0.0
    %135 = vmatpush1.msra.mxu0 0.0
    %136 = vmatprep.subr.mxu0 0.0
    %137 = vmatpush1.msra.mxu0 0.0
    %138 = vmatprep.subr.mxu0 0.0
    %139 = vmatpush1.msra.mxu0 0.0
    %140 = vmatprep.subr.mxu0 0.0
    %141 = vmatpush1.msra.mxu0 0.0
    %142 = vmatprep.subr.mxu0 0.0
    %143 = vmatpush1.msra.mxu0 0.0
    %144 = vmatprep.subr.mxu0 0.0
    %145 = vmatpush1.msra.mxu0 0.0
    %146 = vmatprep.subr.mxu0 0.0
    %147 = vmatpush1.msra.mxu0 0.0
    %148 = vmatprep.subr.mxu0 0.0
    %149 = vmatpush1.msra.mxu0 0.0
    %150 = vmatprep.subr.mxu0 0.0
    %151 = vmatpush1.msra.mxu0 0.0
    %152 = vmatprep.subr.mxu0 0.0
    %153 = vmatpush1.msra.mxu0 0.0
    %154 = vmatprep.mubr.f32.mxu0 0.0
    %155 = vmatmul.mubr.f32.gmra.mrb[0].mxu0 %v88
    %v156 = vpop.f32.mrb[0].mxu0
    %v157 = vadd.f32 0.0, %v156
    %v158 = vpop.f32.mrb[0].mxu0
    %159 = vdwg.mxu0
    %v161 = vsel %vm86, %v75, 0
    %163 = vmatprep.subr.mxu0 0.0
    %164 = vmatpush1.msra.mxu0 %v76
    %165 = vmatprep.subr.mxu0 0.0
    %166 = vmatpush1.msra.mxu0 %v77
    %167 = vmatprep.subr.mxu0 0.0
    %168 = vmatpush1.msra.mxu0 %v78
    %169 = vmatprep.subr.mxu0 0.0
    %170 = vmatpush1.msra.mxu0 %v79
    %171 = vmatprep.subr.mxu0 0.0
    %172 = vmatpush1.msra.mxu0 0.0
    %173 = vmatprep.subr.mxu0 0.0
    %174 = vmatpush1.msra.mxu0 0.0
    %175 = vmatprep.subr.mxu0 0.0
    %176 = vmatpush1.msra.mxu0 0.0
    %177 = vmatprep.subr.mxu0 0.0
    %178 = vmatpush1.msra.mxu0 0.0
    %179 = vmatprep.subr.mxu0 0.0
    %180 = vmatpush1.msra.mxu0 0.0
    %181 = vmatprep.subr.mxu0 0.0
    %182 = vmatpush1.msra.mxu0 0.0
    %183 = vmatprep.subr.mxu0 0.0
    %184 = vmatpush1.msra.mxu0 0.0
    %185 = vmatprep.subr.mxu0 0.0
    %186 = vmatpush1.msra.mxu0 0.0
    %187 = vmatprep.subr.mxu0 0.0
    %188 = vmatpush1.msra.mxu0 0.0
    %189 = vmatprep.subr.mxu0 0.0
    %190 = vmatpush1.msra.mxu0 0.0
    %191 = vmatprep.subr.mxu0 0.0
    %192 = vmatpush1.msra.mxu0 0.0
    %193 = vmatprep.subr.mxu0 0.0
    %194 = vmatpush1.msra.mxu0 0.0
    %195 = vmatprep.subr.mxu0 0.0
    %196 = vmatpush1.msra.mxu0 0.0
    %197 = vmatprep.subr.mxu0 0.0
    %198 = vmatpush1.msra.mxu0 0.0
    %199 = vmatprep.subr.mxu0 0.0
    %200 = vmatpush1.msra.mxu0 0.0
    %201 = vmatprep.subr.mxu0 0.0
    %202 = vmatpush1.msra.mxu0 0.0
    %203 = vmatprep.subr.mxu0 0.0
    %204 = vmatpush1.msra.mxu0 0.0
    %205 = vmatprep.subr.mxu0 0.0
    %206 = vmatpush1.msra.mxu0 0.0
    %207 = vmatprep.subr.mxu0 0.0
    %208 = vmatpush1.msra.mxu0 0.0
    %209 = vmatprep.subr.mxu0 0.0
    %210 = vmatpush1.msra.mxu0 0.0
    %211 = vmatprep.subr.mxu0 0.0
    %212 = vmatpush1.msra.mxu0 0.0
    %213 = vmatprep.subr.mxu0 0.0
    %214 = vmatpush1.msra.mxu0 0.0
    %215 = vmatprep.subr.mxu0 0.0
    %216 = vmatpush1.msra.mxu0 0.0
    %217 = vmatprep.subr.mxu0 0.0
    %218 = vmatpush1.msra.mxu0 0.0
    %219 = vmatprep.subr.mxu0 0.0
    %220 = vmatpush1.msra.mxu0 0.0
    %221 = vmatprep.subr.mxu0 0.0
    %222 = vmatpush1.msra.mxu0 0.0
    %223 = vmatprep.subr.mxu0 0.0
    %224 = vmatpush1.msra.mxu0 0.0
    %225 = vmatprep.subr.mxu0 0.0
    %226 = vmatpush1.msra.mxu0 0.0
    %227 = vmatprep.mubr.f32.mxu0 0.0
    %228 = vmatmul.mubr.f32.gmra.mrb[0].mxu0 %v161
    %v229 = vpop.f32.mrb[0].mxu0
    %v230 = vadd.f32 %v157, %v229
    %v231 = vpop.f32.mrb[0].mxu0
    %232 = vdwg.mxu0
    %v233 = vld [vmem:[#allocation7] sm:$0xff]
    %s234 = scalar_lea.vmem [#allocation8], 64
    %v235 = vld [vmem:[%s234] sm:$0xff]
    %v236 = vld [vmem:[%s234 + $0x8] sm:$0xff]
    %v237 = vld [vmem:[%s234 + $0x10] sm:$0xff]
    %v238 = vld [vmem:[%s234 + $0x18] sm:$0xff]
    %v240 = vsel %vm86, %v233, 0
    %242 = vmatprep.subr.mxu0 0.0
    %243 = vmatpush1.msra.mxu0 %v235
    %244 = vmatprep.subr.mxu0 0.0
    %245 = vmatpush1.msra.mxu0 %v236
    %246 = vmatprep.subr.mxu0 0.0
    %247 = vmatpush1.msra.mxu0 %v237
    %248 = vmatprep.subr.mxu0 0.0
    %249 = vmatpush1.msra.mxu0 %v238
    %250 = vmatprep.subr.mxu0 0.0
    %251 = vmatpush1.msra.mxu0 0.0
    %252 = vmatprep.subr.mxu0 0.0
    %253 = vmatpush1.msra.mxu0 0.0
    %254 = vmatprep.subr.mxu0 0.0
    %255 = vmatpush1.msra.mxu0 0.0
    %256 = vmatprep.subr.mxu0 0.0
    %257 = vmatpush1.msra.mxu0 0.0
    %258 = vmatprep.subr.mxu0 0.0
    %259 = vmatpush1.msra.mxu0 0.0
    %260 = vmatprep.subr.mxu0 0.0
    %261 = vmatpush1.msra.mxu0 0.0
    %262 = vmatprep.subr.mxu0 0.0
    %263 = vmatpush1.msra.mxu0 0.0
    %264 = vmatprep.subr.mxu0 0.0
    %265 = vmatpush1.msra.mxu0 0.0
    %266 = vmatprep.subr.mxu0 0.0
    %267 = vmatpush1.msra.mxu0 0.0
    %268 = vmatprep.subr.mxu0 0.0
    %269 = vmatpush1.msra.mxu0 0.0
    %270 = vmatprep.subr.mxu0 0.0
    %271 = vmatpush1.msra.mxu0 0.0
    %272 = vmatprep.subr.mxu0 0.0
    %273 = vmatpush1.msra.mxu0 0.0
    %274 = vmatprep.subr.mxu0 0.0
    %275 = vmatpush1.msra.mxu0 0.0
    %276 = vmatprep.subr.mxu0 0.0
    %277 = vmatpush1.msra.mxu0 0.0
    %278 = vmatprep.subr.mxu0 0.0
    %279 = vmatpush1.msra.mxu0 0.0
    %280 = vmatprep.subr.mxu0 0.0
    %281 = vmatpush1.msra.mxu0 0.0
    %282 = vmatprep.subr.mxu0 0.0
    %283 = vmatpush1.msra.mxu0 0.0
    %284 = vmatprep.subr.mxu0 0.0
    %285 = vmatpush1.msra.mxu0 0.0
    %286 = vmatprep.subr.mxu0 0.0
    %287 = vmatpush1.msra.mxu0 0.0
    %288 = vmatprep.subr.mxu0 0.0
    %289 = vmatpush1.msra.mxu0 0.0
    %290 = vmatprep.subr.mxu0 0.0
    %291 = vmatpush1.msra.mxu0 0.0
    %292 = vmatprep.subr.mxu0 0.0
    %293 = vmatpush1.msra.mxu0 0.0
    %294 = vmatprep.subr.mxu0 0.0
    %295 = vmatpush1.msra.mxu0 0.0
    %296 = vmatprep.subr.mxu0 0.0
    %297 = vmatpush1.msra.mxu0 0.0
    %298 = vmatprep.subr.mxu0 0.0
    %299 = vmatpush1.msra.mxu0 0.0
    %300 = vmatprep.subr.mxu0 0.0
    %301 = vmatpush1.msra.mxu0 0.0
    %302 = vmatprep.subr.mxu0 0.0
    %303 = vmatpush1.msra.mxu0 0.0
    %304 = vmatprep.subr.mxu0 0.0
    %305 = vmatpush1.msra.mxu0 0.0
    %306 = vmatprep.mubr.f32.mxu0 0.0
    %307 = vmatmul.mubr.f32.gmra.mrb[0].mxu0 %v240
    %v308 = vpop.f32.mrb[0].mxu0
    %v309 = vadd.f32 0.0, %v308
    %v310 = vpop.f32.mrb[0].mxu0
    %311 = vdwg.mxu0
    %v312 = vadd.f32 %v230, %v309
    %v313 = vld [vmem:[%s4] sm:$0x1]
    %v315 = vlaneseq
    %v316 = vshrl.u32 %v315, 7
    %v317 = vsub.s32 0, %v316
    %v318 = vrot.slane %v313, %v317
    %v320 = vadd.f32 %v312, %v318
    %v321 = vtanh.pop %v320
    %v322 = vld [vmem:[%s5] sm:$0x1]
    %v324 = vlaneseq
    %v325 = vshrl.u32 %v324, 7
    %v326 = vsub.s32 0, %v325
    %v327 = vrot.slane %v322, %v326
    %v329 = vmul.f32 %v321, %v327
    %v330 = vsel %vm86, %v329, 0.0
    %331 = vadd.xlane.f32.xlu0 %v330
    %v332 = vpop.xlane.xlu0 %331
    %v333 = vrot.slane %v332, 4
    %v334 = vmax.f32 %v332, %v333
    %v335 = vrot.slane %v334, 2
    %v336 = vmax.f32 %v334, %v335
    %v337 = vrot.slane %v336, 1
    %v338 = vmax.f32 %v336, %v337
    %v339 = vsub.f32 %v332, %v338
    %v340 = vmul.f32 %v339, 1.442695
    %v341 = vpow.pop %v340
    %v342 = vrot.slane %v341, 4
    %v343 = vadd.f32 %v341, %v342
    %v344 = vrot.slane %v343, 2
    %v345 = vadd.f32 %v343, %v344
    %v346 = vrot.slane %v345, 1
    %v347 = vadd.f32 %v345, %v346
    %v348 = vrcp.pop %v347
    %v349 = vmul.f32 %v341, %v348
    %v350 = vmul.f32 %v349, %v75
    %v351 = vsel %vm86, %v350, 0.0
    %v352 = vrot.slane %v351, 4
    %v353 = vadd.f32 %v351, %v352
    %v354 = vrot.slane %v353, 2
    %v355 = vadd.f32 %v353, %v354
    %v356 = vrot.slane %v355, 1
    %v357 = vadd.f32 %v355, %v356
    %vm358 = vcmask 253952
    %359 = vst.msk [vmem:[#allocation10] sm:$0x1] %vm358, %v357
    %vm360 = vcmask 7168
    %361 = vst.msk [vmem:[%s7] sm:$0xff] %vm360, %v349
    // Predicated region
    $region42: #{tpu_custom_call.1} parent=1 // pred_check
      _
    $region43: #{tpu_custom_call.1} parent=1 // pred_check_branch
      %363 = sbr.rel (0) target = $region45
    $region44: #{tpu_custom_call.1} parent=1 // pred_region
      %s365 = ssub.s32 16, 16
      %366 = vsyncadd [#allocation4], %s365
      %s368 = sshll.u32 [#allocation10], 4
      %s369 = int_to_ptr.vmem [resolvable:$true] %s368
      %371 = dma.vmem_to_hbm [thread:$0]  %s369, 16, %s6, [#allocation4]
    $region45: #{tpu_custom_call.1} parent=1 // pred_fallthru
      _
    // Predicated region
    $region46: #{tpu_custom_call.1} parent=1 // pred_check
      _
    $region47: #{tpu_custom_call.1} parent=1 // pred_check_branch
      %373 = sbr.rel (0) target = $region49
    $region48: #{tpu_custom_call.1} parent=1 // pred_region
      _
    $region49: #{tpu_custom_call.1} parent=1 // pred_fallthru
      _
    // Predicated region
    $region50: #{tpu_custom_call.1} parent=1 // pred_check
      _
    $region51: #{tpu_custom_call.1} parent=1 // pred_check_branch
      %375 = sbr.rel (0) target = $region53
    $region52: #{tpu_custom_call.1} parent=1 // pred_region
      %376 = dma.done [#allocation4], 16
    $region53: #{tpu_custom_call.1} parent=1 // pred_fallthru
      _
    // Predicated region
    $region54: #{tpu_custom_call.1} parent=1 // pred_check
      _
    $region55: #{tpu_custom_call.1} parent=1 // pred_check_branch
      %378 = sbr.rel (0) target = $region57
    $region56: #{tpu_custom_call.1} parent=1 // pred_region
      _
    $region57: #{tpu_custom_call.1} parent=1 // pred_fallthru
      _
    %379 = vsyncpa [#allocation3], 1
    %380 = vsyncpa [#allocation6], 1
    %381 = vsyncpa [#allocation9], 1
    %382 = vsyncpa [#allocation4], 1

</llo_original>
